<compile_context>
chip_gen: v7x
topology: tpu7x:2x2x1
jax: 0.10.0
libtpu: 0.0.40
codegen_flags: <defaults>
</compile_context>

<pallas_src>
import functools

import jax
import jax.numpy as jnp
from jax.experimental import pallas as pl
from jax.experimental.pallas import tpu as pltpu

_LANES = 128


def _maybe_int(v):
    try:
        return int(v)
    except (TypeError, ValueError):
        return None


@functools.lru_cache(maxsize=None)
def _tpu_vmem_bytes():
    """Per-core VMEM capacity, with a conservative (v7x-sized) fallback."""
    try:
        info = pltpu.get_tpu_info()
        for attr in ("vmem_capacity_bytes", "vmem_bytes", "vmem_size_bytes"):
            v = _maybe_int(getattr(info, attr, None))
            if v is not None and v > 0:
                return v
    except Exception:
        pass
    return 64 * 1024 * 1024


@functools.lru_cache(maxsize=None)
def _num_tensorcores():
    """TensorCores per chip: 2 on v7x, 1 on v5e/v6e. Wrong guesses stay correct (just masked)."""
    try:
        info = pltpu.get_tpu_info()
        for attr in ("num_tensorcores", "tensorcore_count", "num_cores", "core_count"):
            v = _maybe_int(getattr(info, attr, None))
            if v is not None and 0 < v <= 8:
                return v
    except Exception:
        pass
    try:
        kind = jax.devices()[0].device_kind.lower()
    except Exception:
        kind = ""
    return 2 if "7" in kind else 1


def _ce_kernel(probs_ref, tgt_ref, out_ref, acc_sum, acc_cnt, *,
               ignore_index, total_rows, tiles_per_core):
    """Per-tile masked cross-entropy accumulation.

    probs_ref: (TR, C) probabilities in their native dtype (no full-tile upcast)
    tgt_ref:   (TR, 1) int32 targets (ignore_index rows skipped)
    out_ref:   (1, 128) per-core result block: lane 0 = loss sum, lane 1 = valid count
    acc_sum:   (1, 1) f32 running loss sum for this core
    acc_cnt:   (1, 1) f32 running valid-row count for this core
    """
    c = pl.program_id(0)
    i = pl.program_id(1)

    @pl.when(i == 0)
    def _init():
        acc_sum[...] = jnp.zeros_like(acc_sum)
        acc_cnt[...] = jnp.zeros_like(acc_cnt)

    p = probs_ref[...]                               # (TR, C) native dtype (packed for bf16)
    t = tgt_ref[...]                                 # (TR, 1) int32
    tr, cdim = p.shape

    # CrossEntropy(log(p), t) = logsumexp(log p) - log(p)[t]
    #                         = log(sum_j p_j) - log(sum_j [j == t] p_j)
    col = jax.lax.broadcasted_iota(jnp.int32, (tr, cdim), 1)
    picked = jnp.where(col == t, p, jnp.zeros((), dtype=p.dtype))   # select in packed dtype
    sum_p = jnp.sum(p.astype(jnp.float32), axis=-1, keepdims=True)          # (TR, 1) f32
    picked_p = jnp.sum(picked.astype(jnp.float32), axis=-1, keepdims=True)  # (TR, 1) f32
    # TODO(synk): on v7x, chunk C into 128-lane slices (accumulating f32 partials) and/or use an
    # MXU ones-matmul for sum_p when inputs are natively bf16 to shave VALU ops further.

    # Row validity: inside the (unpadded) array AND target != ignore_index.
    tile_idx = c * tiles_per_core + i
    row = tile_idx * tr + jax.lax.broadcasted_iota(jnp.int32, (tr, 1), 0)
    valid = (row < total_rows) & (t != ignore_index)

    loss = jnp.where(valid, jnp.log(sum_p) - jnp.log(picked_p), 0.0)
    acc_sum[...] += jnp.sum(loss, keepdims=True)
    acc_cnt[...] += jnp.sum(valid.astype(jnp.float32), keepdims=True)

    # Single store per core at the end of this core's row loop.
    @pl.when(i == pl.num_programs(1) - 1)
    def _finalize():
        lane = jax.lax.broadcasted_iota(jnp.int32, (1, _LANES), 1)
        s = jnp.sum(acc_sum[...])
        n = jnp.sum(acc_cnt[...])
        out_ref[...] = jnp.where(lane == 0, s, jnp.where(lane == 1, n, 0.0))


def _pick_tile_rows(n_rows, n_cols, itemsize, *, num_cores, budget_bytes, max_rows=32768):
    """Largest sublane-aligned row tile whose working set fits the VMEM budget."""
    sub = max(8, 32 // itemsize)         # min sublane tile: 8 (f32), 16 (bf16), 32 (int8/fp8)
    # double-buffered probs tile + headroom for one unfused f32 full-tile temporary
    # + double-buffered lane-padded (TR, 1) int32 target block.
    per_row = 2 * n_cols * itemsize + 2 * n_cols * 4 + 2 * _LANES * 4
    rows = budget_bytes // max(per_row, 1)
    rows = max(sub, min(max_rows, (rows // sub) * sub))
    # never tile (far) past each core's share of the rows
    per_core = -(-n_rows // num_cores)
    rows = min(rows, max(sub, ((per_core + sub - 1) // sub) * sub))
    return rows


def ce_loss_pallas(probs, targets, *, ignore_index=-1, tile_rows=None):
    """Masked mean cross-entropy of log(probs) vs integer targets (ignore_index skipped).

    probs:   (R, C) float probabilities
    targets: (R,)   integer class ids (ignore_index rows excluded from sum and count)
    """
    R, C = probs.shape
    itemsize = jnp.dtype(probs.dtype).itemsize

    num_cores = _num_tensorcores()
    vmem_cap = _tpu_vmem_bytes()
    if num_cores >= 2:       # v7x-style chip: only ~64 MiB VMEM per TensorCore -> stay lean
        budget = max(min(vmem_cap // 4, 20 << 20), 8 << 20)
        vmem_limit = max(min(vmem_cap // 2, 48 << 20), 32 << 20)
    else:                    # v5e / v6e: 128 MiB physical VMEM -> open up the tile
        budget = max(min(vmem_cap // 4, 48 << 20), 8 << 20)
        vmem_limit = max(min(vmem_cap // 2, 96 << 20), 32 << 20)

    if tile_rows is None:
        tile_rows = _pick_tile_rows(R, C, itemsize, num_cores=num_cores, budget_bytes=budget)

    total_tiles = pl.cdiv(R, tile_rows)
    tiles_per_core = pl.cdiv(total_tiles, num_cores)

    tgt = targets.reshape(-1, 1).astype(jnp.int32)

    # Clamp so tail steps of the second core never issue an out-of-bounds block DMA;
    # those steps are fully masked inside the kernel via the row-index check.
    def tile_map(c, i):
        return (jnp.minimum(c * tiles_per_core + i, total_tiles - 1), 0)

    kernel = functools.partial(_ce_kernel, ignore_index=ignore_index,
                               total_rows=R, tiles_per_core=tiles_per_core)

    cost = pl.CostEstimate(
        flops=5 * R * C,
        transcendentals=2 * R,
        bytes_accessed=R * C * itemsize + 4 * R + 4 * num_cores * _LANES)

    # TODO(synk): for extreme vocab widths (sub rows * C * itemsize > budget) add a second grid
    # axis chunking C; sum_p / picked_p accumulate trivially across chunks.
    out = pl.pallas_call(
        kernel,
        out_shape=jax.ShapeDtypeStruct((1, num_cores * _LANES), jnp.float32),
        grid_spec=pltpu.PrefetchScalarGridSpec(
            num_scalar_prefetch=0,
            grid=(num_cores, tiles_per_core),
            in_specs=[pl.BlockSpec((tile_rows, C), tile_map),
                      pl.BlockSpec((tile_rows, 1), tile_map)],
            out_specs=pl.BlockSpec((1, _LANES), lambda c, i: (0, c)),
            scratch_shapes=[pltpu.VMEM((1, 1), jnp.float32),
                            pltpu.VMEM((1, 1), jnp.float32)]),
        compiler_params=pltpu.CompilerParams(
            dimension_semantics=("parallel", "arbitrary"),
            vmem_limit_bytes=vmem_limit),
        cost_estimate=cost,
    )(probs, tgt)

    out = out.reshape(num_cores, _LANES)
    return jnp.sum(out[:, 0]) / jnp.sum(out[:, 1])


def ce_loss_total(output0, target0, output1, target1, *, ignore_index=-1):
    """Equivalent of CELossTotal.forward((output0, output1), (target0, target1)).

    CELossShift drops the last time-step of output0 and the first token of target0. Instead of
    slicing the large probability tensor (a full HBM copy), shift the tiny target tensor left
    and mark the final time-step ignore_index -> identical masked sum and count, zero extra HBM
    traffic for the probabilities.
    """
    N0, T0, C0 = output0.shape
    C1 = output1.shape[-1]

    t0_shift = jnp.concatenate(
        [target0[:, 1:], jnp.full((N0, 1), ignore_index, dtype=target0.dtype)], axis=1)

    # TODO(synk): when C0 == C1 the two losses could share one pallas_call (two accumulator lane
    # pairs keyed by a row-range part id) to halve launch/pipeline-ramp overhead for short seqs.
    loss_shift = ce_loss_pallas(output0.reshape(-1, C0), t0_shift.reshape(-1),
                                ignore_index=ignore_index)
    loss_plain = ce_loss_pallas(output1.reshape(-1, C1), target1.reshape(-1),
                                ignore_index=ignore_index)
    return loss_shift + loss_plain


if __name__ == "__main__":
    key = jax.random.PRNGKey(0)
    k0, k1, k2, k3 = jax.random.split(key, 4)

    N, T, C = 2, 8, 32   # small sequence-model shapes: batch=2, seq=8, vocab=32

    # The PyTorch module expects *probabilities* (it applies torch.log before CrossEntropyLoss).
    output0 = jax.nn.softmax(jax.random.normal(k0, (N, T, C), dtype=jnp.float32), axis=-1)
    output1 = jax.nn.softmax(jax.random.normal(k1, (N, T, C), dtype=jnp.float32), axis=-1)

    target0 = jax.random.randint(k2, (N, T), 0, C, dtype=jnp.int32)
    target1 = jax.random.randint(k3, (N, T), 0, C, dtype=jnp.int32)
    # Exercise ignore_index=-1 (the module's default) on a few positions.
    target0 = target0.at[0, 3].set(-1)
    target1 = target1.at[1, 5].set(-1)

    loss = jax.jit(ce_loss_total)(output0, target0, output1, target1)
    loss = jax.block_until_ready(loss)

    # Pure-JAX reference (original logsumexp-over-log(p) formulation).
    def _ref_ce(o, t):
        logits = jnp.log(o.astype(jnp.float32))
        lse = jax.scipy.special.logsumexp(logits, axis=-1)
        picked = jnp.take_along_axis(logits, jnp.maximum(t, 0)[:, None], axis=-1)[:, 0]
        valid = (t != -1)
        return jnp.sum(jnp.where(valid, lse - picked, 0.0)) / jnp.sum(valid)

    ref = (_ref_ce(output0[:, :-1, :].reshape(-1, C), target0[:, 1:].reshape(-1)) +
           _ref_ce(output1.reshape(-1, C), target1.reshape(-1)))
    assert jnp.allclose(loss, ref, rtol=1e-5, atol=1e-5), (loss, ref)

    # bf16 inputs exercise the packed-dtype select path and the 16-row sublane rounding.
    o0_bf, o1_bf = output0.astype(jnp.bfloat16), output1.astype(jnp.bfloat16)
    loss_bf = jax.block_until_ready(jax.jit(ce_loss_total)(o0_bf, target0, o1_bf, target1))
    ref_bf = (_ref_ce(o0_bf[:, :-1, :].reshape(-1, C), target0[:, 1:].reshape(-1)) +
              _ref_ce(o1_bf.reshape(-1, C), target1.reshape(-1)))
    assert jnp.allclose(loss_bf, ref_bf, rtol=2e-2, atol=2e-2), (loss_bf, ref_bf)

    print("KERNEL_OK")
</pallas_src>

<mosaic_0001>
module attributes {stable_mosaic.version = 11 : i64} {
  func.func @_ce_kernel(%arg0: i32, %arg1: i32, %arg2: memref<16x32xf32, #tpu.memory_space<vmem>>, %arg3: memref<16x1xi32, #tpu.memory_space<vmem>>, %arg4: memref<1x128xf32, #tpu.memory_space<vmem>>, %arg5: memref<1x1xf32, #tpu.memory_space<vmem>>, %arg6: memref<1x1xf32, #tpu.memory_space<vmem>>) attributes {dimension_semantics = [#tpu.dimension_semantics<parallel>, #tpu.dimension_semantics<arbitrary>], iteration_bounds = array<i64: 1, 1>, scalar_prefetch = 0 : i64, scratch_operands = 2 : i64, tpu.core_type = #tpu.core_type<tc>, window_params = [{transform_indices = @transform_0, window_bounds = array<i64: 16, 32>}, {transform_indices = @transform_1, window_bounds = array<i64: 16, 1>}, {transform_indices = @transform_2, window_bounds = array<i64: 1, 128>}]} {
    %c0_i32 = arith.constant 0 : i32
    %0 = arith.cmpi eq, %arg1, %c0_i32 : i32
    %1 = arith.extui %0 : i1 to i32
    %c0_i32_0 = arith.constant 0 : i32
    %2 = arith.cmpi ne, %1, %c0_i32_0 : i32
    scf.if %2 {
      %cst_20 = arith.constant 0.000000e+00 : f32
      %51 = vector.broadcast %cst_20 : f32 to vector<1x1xf32>
      %c0_21 = arith.constant 0 : index
      %c0_22 = arith.constant 0 : index
      %52 = vector.load %arg5[%c0_21, %c0_22] : memref<1x1xf32, #tpu.memory_space<vmem>>, vector<1x1xf32>
      tpu.vector_store %arg5[%c0_21, %c0_22], %51 {strides = array<i32>} : memref<1x1xf32, #tpu.memory_space<vmem>>, vector<1x1xf32>,
      %cst_23 = arith.constant 0.000000e+00 : f32
      %53 = vector.broadcast %cst_23 : f32 to vector<1x1xf32>
      %c0_24 = arith.constant 0 : index
      %c0_25 = arith.constant 0 : index
      %54 = vector.load %arg6[%c0_24, %c0_25] : memref<1x1xf32, #tpu.memory_space<vmem>>, vector<1x1xf32>
      tpu.vector_store %arg6[%c0_24, %c0_25], %53 {strides = array<i32>} : memref<1x1xf32, #tpu.memory_space<vmem>>, vector<1x1xf32>,
    } else {
    }
    %c0 = arith.constant 0 : index
    %c0_1 = arith.constant 0 : index
    %3 = vector.load %arg2[%c0, %c0_1] : memref<16x32xf32, #tpu.memory_space<vmem>>, vector<16x32xf32>
    %c0_2 = arith.constant 0 : index
    %c0_3 = arith.constant 0 : index
    %4 = vector.load %arg3[%c0_2, %c0_3] : memref<16x1xi32, #tpu.memory_space<vmem>>, vector<16x1xi32>
    %5 = tpu.iota {dimensions = array<i32: 1>} : vector<16x32xi32>
    %6 = vector.broadcast %4 : vector<16x1xi32> to vector<16x32xi32>
    %7 = arith.cmpi eq, %5, %6 : vector<16x32xi32>
    %cst = arith.constant 0.000000e+00 : f32
    %8 = vector.broadcast %cst : f32 to vector<16x32xf32>
    %9 = arith.select %7, %3, %8 : vector<16x32xi1>, vector<16x32xf32>
    %cst_4 = arith.constant dense<0.000000e+00> : vector<16xf32>
    %10 = vector.multi_reduction <add>, %3, %cst_4 [1] : vector<16x32xf32> to vector<16xf32>
    %11 = vector.shape_cast %10 : vector<16xf32> to vector<16x1xf32>
    %cst_5 = arith.constant dense<0.000000e+00> : vector<16xf32>
    %12 = vector.multi_reduction <add>, %9, %cst_5 [1] : vector<16x32xf32> to vector<16xf32>
    %13 = vector.shape_cast %12 : vector<16xf32> to vector<16x1xf32>
    %c1_i32 = arith.constant 1 : i32
    %14 = arith.muli %arg0, %c1_i32 : i32
    %15 = arith.addi %14, %arg1 : i32
    %c16_i32 = arith.constant 16 : i32
    %16 = arith.muli %15, %c16_i32 : i32
    %17 = tpu.iota {dimensions = array<i32: 0>} : vector<16x1xi32>
    %18 = vector.broadcast %16 : i32 to vector<16x1xi32>
    %19 = arith.addi %18, %17 : vector<16x1xi32>
    %c16_i32_6 = arith.constant 16 : i32
    %20 = vector.broadcast %c16_i32_6 : i32 to vector<16x1xi32>
    %21 = arith.cmpi slt, %19, %20 : vector<16x1xi32>
    %c-1_i32 = arith.constant -1 : i32
    %22 = vector.broadcast %c-1_i32 : i32 to vector<16x1xi32>
    %23 = arith.cmpi ne, %4, %22 : vector<16x1xi32>
    %24 = arith.andi %21, %23 : vector<16x1xi1>
    %25 = math.log %11 : vector<16x1xf32>
    %26 = math.log %13 : vector<16x1xf32>
    %27 = arith.subf %25, %26 : vector<16x1xf32>
    %cst_7 = arith.constant 0.000000e+00 : f32
    %28 = vector.broadcast %cst_7 : f32 to vector<16x1xf32>
    %29 = arith.select %24, %27, %28 : vector<16x1xi1>, vector<16x1xf32>
    %c0_8 = arith.constant 0 : index
    %c0_9 = arith.constant 0 : index
    %30 = vector.load %arg5[%c0_8, %c0_9] : memref<1x1xf32, #tpu.memory_space<vmem>>, vector<1x1xf32>
    %31 = vector.shape_cast %29 : vector<16x1xf32> to vector<1x16x1xf32>
    %cst_10 = arith.constant dense<0.000000e+00> : vector<1xf32>
    %32 = vector.multi_reduction <add>, %31, %cst_10 [1, 2] : vector<1x16x1xf32> to vector<1xf32>
    %33 = vector.shape_cast %32 : vector<1xf32> to vector<1x1x1xf32>
    %34 = vector.extract %33[0, 0, 0] : f32 from vector<1x1x1xf32>
    %35 = vector.broadcast %34 : f32 to vector<1x1xf32>
    %36 = arith.addf %30, %35 : vector<1x1xf32>
    %c0_11 = arith.constant 0 : index
    %c0_12 = arith.constant 0 : index
    %37 = vector.load %arg5[%c0_11, %c0_12] : memref<1x1xf32, #tpu.memory_space<vmem>>, vector<1x1xf32>
    tpu.vector_store %arg5[%c0_11, %c0_12], %36 {strides = array<i32>} : memref<1x1xf32, #tpu.memory_space<vmem>>, vector<1x1xf32>,
    %c0_13 = arith.constant 0 : index
    %c0_14 = arith.constant 0 : index
    %38 = vector.load %arg6[%c0_13, %c0_14] : memref<1x1xf32, #tpu.memory_space<vmem>>, vector<1x1xf32>
    %39 = arith.extui %24 : vector<16x1xi1> to vector<16x1xi32>
    %40 = arith.sitofp %39 : vector<16x1xi32> to vector<16x1xf32>
    %41 = vector.shape_cast %40 : vector<16x1xf32> to vector<1x16x1xf32>
    %cst_15 = arith.constant dense<0.000000e+00> : vector<1xf32>
    %42 = vector.multi_reduction <add>, %41, %cst_15 [1, 2] : vector<1x16x1xf32> to vector<1xf32>
    %43 = vector.shape_cast %42 : vector<1xf32> to vector<1x1x1xf32>
    %44 = vector.extract %43[0, 0, 0] : f32 from vector<1x1x1xf32>
    %45 = vector.broadcast %44 : f32 to vector<1x1xf32>
    %46 = arith.addf %38, %45 : vector<1x1xf32>
    %c0_16 = arith.constant 0 : index
    %c0_17 = arith.constant 0 : index
    %47 = vector.load %arg6[%c0_16, %c0_17] : memref<1x1xf32, #tpu.memory_space<vmem>>, vector<1x1xf32>
    tpu.vector_store %arg6[%c0_16, %c0_17], %46 {strides = array<i32>} : memref<1x1xf32, #tpu.memory_space<vmem>>, vector<1x1xf32>,
    %c0_i32_18 = arith.constant 0 : i32
    %48 = arith.cmpi eq, %arg1, %c0_i32_18 : i32
    %49 = arith.extui %48 : i1 to i32
    %c0_i32_19 = arith.constant 0 : i32
    %50 = arith.cmpi ne, %49, %c0_i32_19 : i32
    scf.if %50 {
      %51 = tpu.iota {dimensions = array<i32: 1>} : vector<1x128xi32>
      %c0_20 = arith.constant 0 : index
      %c0_21 = arith.constant 0 : index
      %52 = vector.load %arg5[%c0_20, %c0_21] : memref<1x1xf32, #tpu.memory_space<vmem>>, vector<1x1xf32>
      %53 = vector.shape_cast %52 : vector<1x1xf32> to vector<1x1x1xf32>
      %cst_22 = arith.constant dense<0.000000e+00> : vector<1xf32>
      %54 = vector.multi_reduction <add>, %53, %cst_22 [1, 2] : vector<1x1x1xf32> to vector<1xf32>
      %55 = vector.shape_cast %54 : vector<1xf32> to vector<1x1x1xf32>
      %56 = vector.extract %55[0, 0, 0] : f32 from vector<1x1x1xf32>
      %c0_23 = arith.constant 0 : index
      %c0_24 = arith.constant 0 : index
      %57 = vector.load %arg6[%c0_23, %c0_24] : memref<1x1xf32, #tpu.memory_space<vmem>>, vector<1x1xf32>
      %58 = vector.shape_cast %57 : vector<1x1xf32> to vector<1x1x1xf32>
      %cst_25 = arith.constant dense<0.000000e+00> : vector<1xf32>
      %59 = vector.multi_reduction <add>, %58, %cst_25 [1, 2] : vector<1x1x1xf32> to vector<1xf32>
      %60 = vector.shape_cast %59 : vector<1xf32> to vector<1x1x1xf32>
      %61 = vector.extract %60[0, 0, 0] : f32 from vector<1x1x1xf32>
      %c0_i32_26 = arith.constant 0 : i32
      %62 = vector.broadcast %c0_i32_26 : i32 to vector<1x128xi32>
      %63 = arith.cmpi eq, %51, %62 : vector<1x128xi32>
      %c1_i32_27 = arith.constant 1 : i32
      %64 = vector.broadcast %c1_i32_27 : i32 to vector<1x128xi32>
      %65 = arith.cmpi eq, %51, %64 : vector<1x128xi32>
      %cst_28 = arith.constant 0.000000e+00 : f32
      %66 = vector.broadcast %61 : f32 to vector<1x128xf32>
      %67 = vector.broadcast %cst_28 : f32 to vector<1x128xf32>
      %68 = arith.select %65, %66, %67 : vector<1x128xi1>, vector<1x128xf32>
      %69 = vector.broadcast %56 : f32 to vector<1x128xf32>
      %70 = arith.select %63, %69, %68 : vector<1x128xi1>, vector<1x128xf32>
      %c0_29 = arith.constant 0 : index
      %c0_30 = arith.constant 0 : index
      %71 = vector.load %arg4[%c0_29, %c0_30] : memref<1x128xf32, #tpu.memory_space<vmem>>, vector<1x128xf32>
      tpu.vector_store %arg4[%c0_29, %c0_30], %70 {strides = array<i32>} : memref<1x128xf32, #tpu.memory_space<vmem>>, vector<1x128xf32>,
    } else {
    }
    return
  }
  func.func @transform_0(%arg0: i32, %arg1: i32) -> (i32, i32) {
    %c1_i32 = arith.constant 1 : i32
    %0 = arith.muli %arg0, %c1_i32 : i32
    %1 = arith.addi %0, %arg1 : i32
    %c0_i32 = arith.constant 0 : i32
    %2 = arith.minsi %1, %c0_i32 : i32
    %c0_i32_0 = arith.constant 0 : i32
    %c0_i32_1 = arith.constant 0 : i32
    return %2, %c0_i32_0 : i32, i32
  }
  func.func @transform_1(%arg0: i32, %arg1: i32) -> (i32, i32) {
    %c1_i32 = arith.constant 1 : i32
    %0 = arith.muli %arg0, %c1_i32 : i32
    %1 = arith.addi %0, %arg1 : i32
    %c0_i32 = arith.constant 0 : i32
    %2 = arith.minsi %1, %c0_i32 : i32
    %c0_i32_0 = arith.constant 0 : i32
    %c0_i32_1 = arith.constant 0 : i32
    return %2, %c0_i32_0 : i32, i32
  }
  func.func @transform_2(%arg0: i32, %arg1: i32) -> (i32, i32) {
    %c0_i32 = arith.constant 0 : i32
    %c0_i32_0 = arith.constant 0 : i32
    return %c0_i32, %arg0 : i32, i32
  }
}

</mosaic_0001>

<llo_original>
// kernel: ce_loss_total.2
$region0: #{ce_loss_total.2}
  #allocation0 [shape = 'u32[]', space=smem, size = 0x4, offset = 0x4, fixed_abs, tag = 'smem constant byte address 0x4 - core index']
  #allocation1 [shape = 'u32[144,128]{1,0:T(1,128)}', space=vmem, size = 0x12000, scoped, tag = 'internal scratch']
  #allocation2 [shape = 'f32[1,1]{1,0:T(1,128)}', space=vmem, size = 0x200, scoped, tag = 'scratch operand']
  #allocation3 [shape = 'f32[1,1]{1,0:T(1,128)}', space=vmem, size = 0x200, scoped, tag = 'scratch operand']
  %s0 = inlined_call_operand.vmem [shape: f32[16,32], index: 0, kind: input, shape index: {}]
  %s1 = inlined_call_operand.vmem [shape: s32[16,1], index: 1, kind: input, shape index: {}]
  %s2 = inlined_call_operand.vmem [shape: f32[1,128], index: 2, kind: output, shape index: {}]
  %s3 = sld [smem:[#allocation0]]
  $region26: #{ce_loss_total.2} parent=0
    _
  %s5 = ssub.s32 1, %s3
  %s6 = scalar_select 0, %s5, %s3
  // Predicated region
  $region2: #{ce_loss_total.2} parent=0 // pred_check
    _
  $region3: #{ce_loss_total.2} parent=0 // pred_check_branch
    %8 = sbr.rel (0) target = $region5
  $region4: #{ce_loss_total.2} parent=0 // pred_region
    %s9 = sadd.s32 0, 0
    %p10 = scmp.lt.s32.totalorder %s9, 0
    %s11 = scalar_select %p10, %s9, 0
    %s12 = smul.u32 2, %s11
    %p13 = scmp.lt.s32.totalorder %s12, 1
    %s14 = scalar_select %p13, %s12, 1
    %s15 = smul.addr %s14, 8
    %s16 = scalar_lea.vmem %s0, %s15
    %s17 = sadd.s32 0, 0
    %p18 = scmp.lt.s32.totalorder %s17, 0
    %s19 = scalar_select %p18, %s17, 0
    %s20 = smul.u32 2, %s19
  $region5: #{ce_loss_total.2} parent=0 // pred_fallthru
    _
  // Predicated region
  $region6: #{ce_loss_total.2} parent=0 // pred_check
    _
  $region7: #{ce_loss_total.2} parent=0 // pred_check_branch
    %22 = sbr.rel (0) target = $region9
  $region8: #{ce_loss_total.2} parent=0 // pred_region
    %s23 = sadd.s32 0, 0
    %p24 = scmp.lt.s32.totalorder %s23, 0
    %s25 = scalar_select %p24, %s23, 0
    %s26 = smul.u32 2, %s25
    %p27 = scmp.lt.s32.totalorder %s26, 1
    %s28 = scalar_select %p27, %s26, 1
    %s29 = smul.addr %s28, 8
    %s30 = scalar_lea.vmem %s1, %s29
    %s31 = sadd.s32 0, 0
    %p32 = scmp.lt.s32.totalorder %s31, 0
    %s33 = scalar_select %p32, %s31, 0
    %s34 = smul.u32 2, %s33
  $region9: #{ce_loss_total.2} parent=0 // pred_fallthru
    _
  %s35 = sadd.s32 0, 0
  %p36 = scmp.lt.s32.totalorder %s35, 0
  %s37 = scalar_select %p36, %s35, 0
  %s38 = smul.u32 2, %s37
  %p39 = scmp.lt.s32.totalorder %s38, 1
  %s40 = scalar_select %p39, %s38, 1
  %s41 = smul.addr %s40, 8
  %s42 = scalar_lea.vmem %s0, %s41
  %s43 = sadd.s32 0, 0
  %p44 = scmp.lt.s32.totalorder %s43, 0
  %s45 = scalar_select %p44, %s43, 0
  %s46 = smul.u32 2, %s45
  %p47 = scmp.lt.s32.totalorder %s46, 1
  %s48 = scalar_select %p47, %s46, 1
  %s49 = smul.addr %s48, 8
  %s50 = scalar_lea.vmem %s1, %s49
  %s51 = sadd.s32 0, 0
  %p52 = scmp.lt.s32.totalorder %s51, 0
  %s53 = scalar_select %p52, %s51, 0
  %s54 = smul.u32 2, %s53
  %p55 = scmp.lt.s32.totalorder %s54, 1
  %s56 = scalar_select %p55, %s54, 1
  %s57 = smul.addr %s56, 8
  %s58 = scalar_lea.vmem %s0, %s57
  %s59 = sadd.s32 0, 0
  %p60 = scmp.lt.s32.totalorder %s59, 0
  %s61 = scalar_select %p60, %s59, 0
  %s62 = smul.u32 2, %s61
  %s63 = sadd.s32 0, 0
  %p64 = scmp.lt.s32.totalorder %s63, 0
  %s65 = scalar_select %p64, %s63, 0
  %s66 = smul.u32 2, %s65
  %p67 = scmp.lt.s32.totalorder %s66, 1
  %s68 = scalar_select %p67, %s66, 1
  %s69 = smul.addr %s68, 8
  %s70 = scalar_lea.vmem %s1, %s69
  %s71 = sadd.s32 0, 0
  %p72 = scmp.lt.s32.totalorder %s71, 0
  %s73 = scalar_select %p72, %s71, 0
  %s74 = smul.u32 2, %s73
  %p75 = scmp.eq.s32.totalorder 0, 0
  // Predicated region
  $region10: #{ce_loss_total.2} parent=0 // pred_check
    %p76 = pneg %p75
  $region11: #{ce_loss_total.2} parent=0 // pred_check_branch
    %78 = sbr.rel (%p76) target = $region13
  $region12: #{ce_loss_total.2} parent=0 // pred_region
    %vm79 = vcmask 0
    %80 = vst.msk [vmem:[#allocation2] sm:$0x1] %vm79, 0.0
    %81 = vst.msk [vmem:[#allocation3] sm:$0x1] %vm79, 0.0
  $region13: #{ce_loss_total.2} parent=0 // pred_fallthru
    _
  %v82 = vld [vmem:[%s58] sm:$0xff]
  %v83 = vld [vmem:[%s58 + $0x8] sm:$0xff]
  %v84 = vld [vmem:[%s70] sm:$0xff]
  %v85 = vld [vmem:[%s70 + $0x8] sm:$0xff]
  %v86 = vlaneseq
  %v87 = vand.u32 %v86, 127
  %88 = vset.pattern.permute.xlu0 0
  %89 = vperm.xlu0 %88, %v84
  %v90 = vpop.permute.xlu0 %89
  %91 = vset.pattern.permute.xlu0 0
  %92 = vperm.xlu0 %91, %v85
  %v93 = vpop.permute.xlu0 %92
  %vm94 = vcmp.eq.s32.totalorder %v87, %v90
  %vm95 = vcmp.eq.s32.totalorder %v87, %v93
  %v96 = vsel %vm94, %v82, 0.0
  %v97 = vsel %vm95, %v83, 0.0
  %vm98 = vcmask 261120
  %v99 = vsel %vm98, %v82, 0.0
  %100 = vadd.xlane.f32.xlu0 %v99
  %v101 = vpop.xlane.xlu0 %100
  %v102 = vsel %vm98, %v83, 0.0
  %103 = vadd.xlane.f32.xlu0 %v102
  %v104 = vpop.xlane.xlu0 %103
  %v105 = vsel %vm98, %v96, 0.0
  %106 = vadd.xlane.f32.xlu0 %v105
  %v107 = vpop.xlane.xlu0 %106
  %v108 = vsel %vm98, %v97, 0.0
  %109 = vadd.xlane.f32.xlu0 %v108
  %v110 = vpop.xlane.xlu0 %109
  %s111 = sadd.s32 0, 0
  %s112 = smul.u32 %s111, 16
  %v113 = vlaneseq
  %v114 = vshrl.u32 %v113, 7
  %v115 = vadd.s32 %v114, 8
  %v116 = vstv %s112
  %v117 = vadd.s32 %v116, %v114
  %v118 = vadd.s32 %v116, %v115
  %vm119 = vcmp.lt.s32.totalorder %v117, 16
  %vm120 = vcmp.lt.s32.totalorder %v118, 16
  %vm121 = vcmp.ne.s32.totalorder %v84, 4294967295
  %vm122 = vcmp.ne.s32.totalorder %v85, 4294967295
  %vm123 = vmand %vm119, %vm121
  %vm124 = vmand %vm120, %vm122
  %v125 = vlog2.pop %v101
  %v126 = vmul.f32 %v125, 0.6931472
  %v127 = vlog2.pop %v104
  %v128 = vmul.f32 %v127, 0.6931472
  %v129 = vlog2.pop %v107
  %v130 = vmul.f32 %v129, 0.6931472
  %v131 = vlog2.pop %v110
  %v132 = vmul.f32 %v131, 0.6931472
  %v133 = vsub.f32 %v126, %v130
  %v134 = vsub.f32 %v128, %v132
  %v135 = vsel %vm123, %v133, 0.0
  %v136 = vsel %vm124, %v134, 0.0
  %v137 = vld [vmem:[#allocation2] sm:$0x1]
  %vm138 = vcmask 7168
  %v139 = vsel %vm138, %v135, 0.0
  %v140 = vsel %vm138, %v136, 0.0
  %v141 = vadd.f32 %v139, %v140
  %142 = vadd.xlane.f32.xlu0 %v141
  %v143 = vpop.xlane.xlu0 %142
  %v144 = vrot.slane %v143, 4
  %v145 = vadd.f32 %v143, %v144
  %v146 = vrot.slane %v145, 2
  %v147 = vadd.f32 %v145, %v146
  %v148 = vrot.slane %v147, 1
  %v149 = vadd.f32 %v147, %v148
  %s150 = vtos %v149
  %v151 = vstv %s150
  %v152 = vadd.f32 %v137, %v151
  %vm153 = vcmask 0
  %154 = vst.msk [vmem:[#allocation2] sm:$0x1] %vm153, %v152
  %v155 = vld [vmem:[#allocation3] sm:$0x1]
  %v156 = vsel %vm123, 1, 0
  %v157 = vsel %vm124, 1, 0
  %v158 = vcvt.s32.f32 %v156
  %v159 = vcvt.s32.f32 %v157
  %v160 = vsel %vm138, %v158, 0.0
  %v161 = vsel %vm138, %v159, 0.0
  %v162 = vadd.f32 %v160, %v161
  %163 = vadd.xlane.f32.xlu0 %v162
  %v164 = vpop.xlane.xlu0 %163
  %v165 = vrot.slane %v164, 4
  %v166 = vadd.f32 %v164, %v165
  %v167 = vrot.slane %v166, 2
  %v168 = vadd.f32 %v166, %v167
  %v169 = vrot.slane %v168, 1
  %v170 = vadd.f32 %v168, %v169
  %s171 = vtos %v170
  %v172 = vstv %s171
  %v173 = vadd.f32 %v155, %v172
  %174 = vst.msk [vmem:[#allocation3] sm:$0x1] %vm153, %v173
  // Predicated region
  $region14: #{ce_loss_total.2} parent=0 // pred_check
    %p175 = pneg %p75
  $region15: #{ce_loss_total.2} parent=0 // pred_check_branch
    %177 = sbr.rel (%p175) target = $region17
  $region16: #{ce_loss_total.2} parent=0 // pred_region
    %v178 = vld [vmem:[#allocation2] sm:$0x1]
    %v179 = vadd.f32 %v178, 0.0
    %s180 = vtos %v179
    %v181 = vld [vmem:[#allocation3] sm:$0x1]
    %v182 = vadd.f32 %v181, 0.0
    %s183 = vtos %v182
    %vm184 = vcmp.eq.s32.totalorder %v87, 0
    %vm185 = vcmp.eq.s32.totalorder %v87, 1
    %v186 = vstv %s183
    %v187 = vsel %vm185, %v186, 0.0
    %v188 = vstv %s180
    %v189 = vsel %vm184, %v188, %v187
    %190 = vst [vmem:[%s2] sm:$0x1] %v189
  $region17: #{ce_loss_total.2} parent=0 // pred_fallthru
    _
  // Predicated region
  $region18: #{ce_loss_total.2} parent=0 // pred_check
    _
  $region19: #{ce_loss_total.2} parent=0 // pred_check_branch
    %192 = sbr.rel (0) target = $region21
  $region20: #{ce_loss_total.2} parent=0 // pred_region
    _
  $region21: #{ce_loss_total.2} parent=0 // pred_fallthru
    _
  // Predicated region
  $region22: #{ce_loss_total.2} parent=0 // pred_check
    _
  $region23: #{ce_loss_total.2} parent=0 // pred_check_branch
    %194 = sbr.rel (0) target = $region25
  $region24: #{ce_loss_total.2} parent=0 // pred_region
    _
  $region25: #{ce_loss_total.2} parent=0 // pred_fallthru
    _

</llo_original>
